<compile_context>
chip_gen: v7x
topology: tpu7x:2x2x1
jax: 0.10.0
libtpu: 0.0.40
codegen_flags: <defaults>
</compile_context>

<pallas_src>
import jax
import jax.numpy as jnp
from jax.experimental import pallas as pl
from jax.experimental.pallas import tpu as pltpu


# ----------------------------------------------------------------------------
# Helpers
# ----------------------------------------------------------------------------
def _round_up(a, b):
    return ((a + b - 1) // b) * b


def _vmem_need_bytes(tm, tn, kp, in_itemsize, out_itemsize):
    # Double-buffered x block + weight block + output block.
    return 2 * (tm * kp * in_itemsize + kp * tn * in_itemsize + tm * tn * out_itemsize)


# ----------------------------------------------------------------------------
# Pallas matmul kernel:  o[tm, tn] = x[tm, Kp] @ w_t[Kp, tn]  (K collapsed)
# ----------------------------------------------------------------------------
def _decoder_matmul_kernel(x_ref, wt_ref, o_ref):
    o_ref[...] = jnp.dot(
        x_ref[...], wt_ref[...], preferred_element_type=jnp.float32
    ).astype(o_ref.dtype)


def decoder_matmul_padded(x_p, w_t_p, *, tm, tn, out_dtype):
    """out[Mp, Np] = x_p[Mp, Kp] @ w_t_p[Kp, Np].  All dims pre-padded to tiles."""
    Mp, Kp = x_p.shape
    Kp2, Np = w_t_p.shape
    assert Kp == Kp2 and Mp % tm == 0 and Np % tn == 0

    # j (vocab tiles) innermost -> x block index constant in j -> x stays
    # resident in VMEM across the whole vocab sweep (do NOT swap axes).
    grid = (Mp // tm, Np // tn)

    in_itemsize = x_p.dtype.itemsize
    w_itemsize = w_t_p.dtype.itemsize
    out_itemsize = jnp.dtype(out_dtype).itemsize
    n_m_tiles = grid[0]
    bytes_accessed = (
        Mp * Kp * in_itemsize                 # x: read once per M tile (resident in j)
        + n_m_tiles * Kp * Np * w_itemsize    # weight: re-streamed once per M tile
        + Mp * Np * out_itemsize              # logits write-back
    )

    return pl.pallas_call(
        _decoder_matmul_kernel,
        out_shape=jax.ShapeDtypeStruct((Mp, Np), out_dtype),
        grid_spec=pltpu.PrefetchScalarGridSpec(
            num_scalar_prefetch=0,
            grid=grid,
            in_specs=[
                # X block index constant across j -> DMA'd once per i.
                pl.BlockSpec((tm, Kp), lambda i, j: (i, 0)),
                # Weight streams across j (full K per block).
                pl.BlockSpec((Kp, tn), lambda i, j: (0, j)),
            ],
            out_specs=pl.BlockSpec((tm, tn), lambda i, j: (i, j)),
        ),
        compiler_params=pltpu.CompilerParams(
            dimension_semantics=("parallel", "parallel"),
            # Tiles are budgeted to <= 12 MiB double-buffered; 32 MiB scoped
            # limit is safe on v5e/v6e/v7x and leaves pipeline headroom.
            vmem_limit_bytes=32 << 20,
        ),
        cost_estimate=pl.CostEstimate(
            flops=2 * Mp * Np * Kp,
            transcendentals=0,
            bytes_accessed=bytes_accessed,
        ),
    )(x_p, w_t_p)


# ----------------------------------------------------------------------------
# LinearDecoder module (JAX side)
# ----------------------------------------------------------------------------
class LinearDecoder:
    initrange = 0.1

    def __init__(self, n_out, n_hid, dropout, key, tie_encoder=None, bias=False,
                 compute_dtype=jnp.bfloat16, out_dtype=jnp.bfloat16,
                 tm_max=512, tn_max=1024, vmem_tile_budget=12 << 20):
        # TODO(synk): bias=True (zero-init bias add) not implemented; the fastai
        # LM decoder uses bias=False.
        assert not bias, "bias=False is the configuration used here"
        self.n_out = n_out
        self.n_hid = n_hid
        self.dropout = dropout
        self.compute_dtype = compute_dtype
        self.out_dtype = out_dtype            # bf16 logits write-back by default
        self.tm_max = tm_max
        self.vmem_tile_budget = vmem_tile_budget

        # ---- tile plan (depends only on n_hid / n_out -> decided once) ----
        self.Kp = _round_up(n_hid, 128)       # MXU/lane-aligned contraction dim
        in_sz = jnp.dtype(compute_dtype).itemsize
        out_sz = jnp.dtype(out_dtype).itemsize
        tn = min(tn_max, _round_up(n_out, 128))
        while (_vmem_need_bytes(tm_max, tn, self.Kp, in_sz, out_sz)
               > vmem_tile_budget and tn > 128):
            tn = max(128, _round_up(tn // 2, 128))
        self.tn = tn
        self.Np = _round_up(n_out, tn)

        # ---- weight: nn.Linear shape (n_out, n_hid), init uniform(-0.1, 0.1) ----
        if tie_encoder is not None:
            w = jnp.asarray(tie_encoder.weight, dtype=jnp.float32)
        else:
            w = jax.random.uniform(
                key, (n_out, n_hid),
                minval=-self.initrange, maxval=self.initrange, dtype=jnp.float32,
            )
        self.weight = w
        # Transpose + cast + pad (K->Kp, N->Np) ONCE; never touched per call.
        w_t = jnp.asarray(w.T, dtype=compute_dtype)               # (n_hid, n_out)
        self.weight_t = jnp.pad(
            w_t, ((0, self.Kp - n_hid), (0, self.Np - n_out))
        )                                                          # (Kp, Np)

        # TODO(synk): training-mode LockedDropout (per-(batch,hid) mask shared
        # over seq) is not implemented; forward below corresponds to eval mode
        # / dropout=0.0, where LockedDropout is the identity.

    def __call__(self, inp):
        raw_outputs, outputs = inp
        output = outputs[-1]                          # (seq, batch, n_hid)
        S, B, H = output.shape
        assert H == self.n_hid
        M = S * B
        x = output.reshape(M, H).astype(self.compute_dtype)   # .view(S*B, n_hid)

        # Per-call M-tile choice (M = seq*batch is the only runtime-varying dim).
        in_sz = jnp.dtype(self.compute_dtype).itemsize
        out_sz = jnp.dtype(self.out_dtype).itemsize
        tm = min(self.tm_max, _round_up(M, 8))
        while (_vmem_need_bytes(tm, self.tn, self.Kp, in_sz, out_sz)
               > self.vmem_tile_budget and tm > 8):
            tm = max(8, _round_up(tm // 2, 8))
        Mp = _round_up(M, tm)

        # Only the small activation gets padded per call (weight is pre-padded).
        if Mp != M or self.Kp != H:
            x = jnp.pad(x, ((0, Mp - M), (0, self.Kp - H)))

        dec_p = decoder_matmul_padded(
            x, self.weight_t, tm=tm, tn=self.tn, out_dtype=self.out_dtype
        )                                              # (Mp, Np)

        # Crop back to the module's exact semantics (S*B, n_out).
        # TODO(synk): for very large vocabs, prefer returning the padded logits
        # and masking the padded columns in the loss; this crop materializes a
        # second copy of the logits tensor.
        if Mp != M or self.Np != self.n_out:
            decoded = dec_p[:M, :self.n_out]
        else:
            decoded = dec_p

        result = decoded.reshape(-1, decoded.shape[1])  # .view(-1, n_out)
        return (result, raw_outputs, outputs)


# ----------------------------------------------------------------------------
# Demo / correctness check (small shapes exercising K, N padding)
# ----------------------------------------------------------------------------
if __name__ == "__main__":
    key = jax.random.PRNGKey(0)
    k_w, k_o1, k_o2 = jax.random.split(key, 3)

    seq, batch = 8, 2           # M = 16
    n_hid, n_out = 48, 300      # K = 48 -> padded to 128, N = 300 -> padded to 384

    # Simulated RNN stack outputs (two layers); last one is (seq, batch, n_hid)
    outputs = [
        jax.random.normal(k_o1, (seq, batch, n_hid), dtype=jnp.float32),
        jax.random.normal(k_o2, (seq, batch, n_hid), dtype=jnp.float32),
    ]
    raw_outputs = outputs  # in fastai these are the pre-dropout activations

    dec = LinearDecoder(n_out, n_hid, dropout=0.0, key=k_w, bias=False)

    result, ro, o = dec((raw_outputs, outputs))
    result = jax.block_until_ready(result)

    assert result.shape == (seq * batch, n_out)
    assert result.dtype == jnp.bfloat16

    # Reference 1: same bf16-in / f32-accumulate / bf16-out contraction in plain JAX
    x_bf16 = outputs[-1].reshape(seq * batch, n_hid).astype(jnp.bfloat16)
    ref_bf16 = jnp.dot(
        x_bf16, dec.weight.T.astype(jnp.bfloat16), preferred_element_type=jnp.float32
    ).astype(jnp.bfloat16)
    assert jnp.allclose(result.astype(jnp.float32), ref_bf16.astype(jnp.float32),
                        atol=2e-2, rtol=2e-2)

    # Reference 2: full-f32 math (bf16 quantization tolerance)
    ref_f32 = outputs[-1].reshape(seq * batch, n_hid) @ dec.weight.T
    assert jnp.allclose(result.astype(jnp.float32), ref_f32, atol=5e-2, rtol=5e-2)

    print("KERNEL_OK")
</pallas_src>

<mosaic_0001>
module attributes {stable_mosaic.version = 11 : i64} {
  func.func @_decoder_matmul_kernel(%arg0: i32, %arg1: i32, %arg2: memref<16x128xbf16, #tpu.memory_space<vmem>>, %arg3: memref<128x384xbf16, #tpu.memory_space<vmem>>, %arg4: memref<16x384xbf16, #tpu.memory_space<vmem>>) attributes {dimension_semantics = [#tpu.dimension_semantics<parallel>, #tpu.dimension_semantics<parallel>], iteration_bounds = array<i64: 1, 1>, scalar_prefetch = 0 : i64, scratch_operands = 0 : i64, tpu.core_type = #tpu.core_type<tc>, window_params = [{transform_indices = @transform_0, window_bounds = array<i64: 16, 128>}, {transform_indices = @transform_1, window_bounds = array<i64: 128, 384>}, {transform_indices = @transform_2, window_bounds = array<i64: 16, 384>}]} {
    %c0 = arith.constant 0 : index
    %c0_0 = arith.constant 0 : index
    %0 = vector.load %arg2[%c0, %c0_0] : memref<16x128xbf16, #tpu.memory_space<vmem>>, vector<16x128xbf16>
    %c0_1 = arith.constant 0 : index
    %c0_2 = arith.constant 0 : index
    %1 = vector.load %arg3[%c0_1, %c0_2] : memref<128x384xbf16, #tpu.memory_space<vmem>>, vector<128x384xbf16>
    %cst = arith.constant dense<0.000000e+00> : vector<16x384xf32>
    %2 = tpu.matmul %0, %1, %cst {dimension_numbers = #tpu.dot_dimension_numbers<[1], [0], [0], [1], [0, 0, 1, 1], [], []>} : vector<16x128xbf16>, vector<128x384xbf16>, vector<16x384xf32> -> vector<16x384xf32>
    %3 = arith.truncf %2 : vector<16x384xf32> to vector<16x384xbf16>
    %c0_3 = arith.constant 0 : index
    %c0_4 = arith.constant 0 : index
    %4 = vector.load %arg4[%c0_3, %c0_4] : memref<16x384xbf16, #tpu.memory_space<vmem>>, vector<16x384xbf16>
    tpu.vector_store %arg4[%c0_3, %c0_4], %3 {strides = array<i32>} : memref<16x384xbf16, #tpu.memory_space<vmem>>, vector<16x384xbf16>,
    return
  }
  func.func @transform_0(%arg0: i32, %arg1: i32) -> (i32, i32) {
    %c0_i32 = arith.constant 0 : i32
    %c0_i32_0 = arith.constant 0 : i32
    return %arg0, %c0_i32 : i32, i32
  }
  func.func @transform_1(%arg0: i32, %arg1: i32) -> (i32, i32) {
    %c0_i32 = arith.constant 0 : i32
    %c0_i32_0 = arith.constant 0 : i32
    return %c0_i32, %arg1 : i32, i32
  }
  func.func @transform_2(%arg0: i32, %arg1: i32) -> (i32, i32) {
    %c0_i32 = arith.constant 0 : i32
    return %arg0, %arg1 : i32, i32
  }
}

</mosaic_0001>

<llo_original>
// kernel: tpu_custom_call.1
$region0: #{tpu_custom_call.1}
  #allocation0 [shape = 'u32[]', space=smem, size = 0x4, offset = 0x4, fixed_abs, tag = 'smem constant byte address 0x4 - core index']
  #allocation1 [shape = 'u32[144,128]{1,0:T(1,128)}', space=vmem, size = 0x12000, scoped, tag = 'internal scratch']
  %s0 = inlined_call_operand.hbm [shape: bf16[16,128], index: 0, kind: input, shape index: {}]
  %s1 = inlined_call_operand.hbm [shape: bf16[128,384], index: 1, kind: input, shape index: {}]
  %s2 = inlined_call_operand.hbm [shape: bf16[16,384], index: 2, kind: output, shape index: {}]
  %s3 = sld [smem:[#allocation0]]
  $region26: #{tpu_custom_call.1} parent=0
    _
  %s5 = ssub.s32 1, %s3
  %s6 = scalar_select 0, %s5, %s3
  $region1: #{tpu_custom_call.1} parent=0
    #allocation2 [shape = 'u8[4096]{0}', space=vmem, size = 0x1000, scoped, tag = 'input window, operand 0, single buffered']
    #allocation3 [shape = 's32[1]{0}', space=sflag, size = 0x4, scoped, tag = 'scoped memory for tpu_custom_call.1']
    #allocation4 [shape = 's32[1]{0}', space=sflag, size = 0x4, scoped, tag = 'scoped memory for tpu_custom_call.1']
    #allocation5 [shape = 'u8[98304]{0}', space=vmem, size = 0x18000, scoped, tag = 'input window, operand 1, single buffered']
    #allocation6 [shape = 's32[1]{0}', space=sflag, size = 0x4, scoped, tag = 'scoped memory for tpu_custom_call.1']
    #allocation7 [shape = 'u8[12288]{0}', space=vmem, size = 0x3000, scoped, tag = 'output window, operand 0, single buffered']
    %7 = vsyncpa [#allocation3], 0
    %8 = vsyncpa [#allocation6], 0
    %9 = vsyncpa [#allocation4], 0
    // Predicated region
    $region2: #{tpu_custom_call.1} parent=1 // pred_check
      _
    $region3: #{tpu_custom_call.1} parent=1 // pred_check_branch
      %11 = sbr.rel (0) target = $region5
    $region4: #{tpu_custom_call.1} parent=1 // pred_region
      %s13 = ssub.s32 128, 128
      %14 = vsyncadd [#allocation3], %s13
      %s15 = sshll.u32 [#allocation2], 4
      %s16 = int_to_ptr.vmem [resolvable:$true] %s15
      %21 = dma.hbm_to_vmem [thread:$0]  %s0, 128, %s16, [#allocation3], 64, 64, 4
    $region5: #{tpu_custom_call.1} parent=1 // pred_fallthru
      _
    // Predicated region
    $region6: #{tpu_custom_call.1} parent=1 // pred_check
      _
    $region7: #{tpu_custom_call.1} parent=1 // pred_check_branch
      %23 = sbr.rel (0) target = $region9
    $region8: #{tpu_custom_call.1} parent=1 // pred_region
      %s25 = ssub.s32 3072, 3072
      %26 = vsyncadd [#allocation6], %s25
      %s27 = sshll.u32 [#allocation5], 4
      %s28 = int_to_ptr.vmem [resolvable:$true] %s27
      %33 = dma.hbm_to_vmem [thread:$0]  %s1, 3072, %s28, [#allocation6], 192, 192, 12
    $region9: #{tpu_custom_call.1} parent=1 // pred_fallthru
      _
    // Predicated region
    $region10: #{tpu_custom_call.1} parent=1 // pred_check
      _
    $region11: #{tpu_custom_call.1} parent=1 // pred_check_branch
      %35 = sbr.rel (0) target = $region13
    $region12: #{tpu_custom_call.1} parent=1 // pred_region
      %36 = dma.done [#allocation3], 128
    $region13: #{tpu_custom_call.1} parent=1 // pred_fallthru
      _
    // Predicated region
    $region14: #{tpu_custom_call.1} parent=1 // pred_check
      _
    $region15: #{tpu_custom_call.1} parent=1 // pred_check_branch
      %38 = sbr.rel (0) target = $region17
    $region16: #{tpu_custom_call.1} parent=1 // pred_region
      %39 = dma.done [#allocation6], 3072
    $region17: #{tpu_custom_call.1} parent=1 // pred_fallthru
      _
    %v41 = vld [vmem:[#allocation2] sm:$0xf]
    %v42 = vld [vmem:[#allocation2 + $0x4] sm:$0xf]
    %v43 = vld [vmem:[#allocation5] sm:$0xff]
    %v44 = vld [vmem:[#allocation5 + $0x8] sm:$0xf]
    %v45 = vld [vmem:[#allocation5 + $0xc] sm:$0xff]
    %v46 = vld [vmem:[#allocation5 + $0x14] sm:$0xf]
    %v47 = vld [vmem:[#allocation5 + $0x18] sm:$0xff]
    %v48 = vld [vmem:[#allocation5 + $0x20] sm:$0xf]
    %v49 = vld [vmem:[#allocation5 + $0x24] sm:$0xff]
    %v50 = vld [vmem:[#allocation5 + $0x2c] sm:$0xf]
    %v51 = vld [vmem:[#allocation5 + $0x30] sm:$0xff]
    %v52 = vld [vmem:[#allocation5 + $0x38] sm:$0xf]
    %v53 = vld [vmem:[#allocation5 + $0x3c] sm:$0xff]
    %v54 = vld [vmem:[#allocation5 + $0x44] sm:$0xf]
    %v55 = vld [vmem:[#allocation5 + $0x48] sm:$0xff]
    %v56 = vld [vmem:[#allocation5 + $0x50] sm:$0xf]
    %v57 = vld [vmem:[#allocation5 + $0x54] sm:$0xff]
    %v58 = vld [vmem:[#allocation5 + $0x5c] sm:$0xf]
    %v59 = vld [vmem:[#allocation5 + $0x60] sm:$0xff]
    %v60 = vld [vmem:[#allocation5 + $0x68] sm:$0xf]
    %v61 = vld [vmem:[#allocation5 + $0x6c] sm:$0xff]
    %v62 = vld [vmem:[#allocation5 + $0x74] sm:$0xf]
    %v63 = vld [vmem:[#allocation5 + $0x78] sm:$0xff]
    %v64 = vld [vmem:[#allocation5 + $0x80] sm:$0xf]
    %v65 = vld [vmem:[#allocation5 + $0x84] sm:$0xff]
    %v66 = vld [vmem:[#allocation5 + $0x8c] sm:$0xf]
    %v67 = vld [vmem:[#allocation5 + $0x90] sm:$0xff]
    %v68 = vld [vmem:[#allocation5 + $0x98] sm:$0xf]
    %v69 = vld [vmem:[#allocation5 + $0x9c] sm:$0xff]
    %v70 = vld [vmem:[#allocation5 + $0xa4] sm:$0xf]
    %v71 = vld [vmem:[#allocation5 + $0xa8] sm:$0xff]
    %v72 = vld [vmem:[#allocation5 + $0xb0] sm:$0xf]
    %v73 = vld [vmem:[#allocation5 + $0xb4] sm:$0xff]
    %v74 = vld [vmem:[#allocation5 + $0xbc] sm:$0xf]
    %v77 = vunpack.c.l.b16 %v41
    %v78 = vunpack.c.l.b16 %v42
    %v79 = vpack.c.b16 %v78, %v77
    %v113 = vunpack.c.l.b16 %v43
    %v114 = vunpack.c.h.b16 %v43
    %v115 = vunpack.c.l.b16 %v44
    %v116 = vunpack.c.l.b16 %v45
    %v117 = vunpack.c.h.b16 %v45
    %v118 = vunpack.c.l.b16 %v46
    %v119 = vunpack.c.l.b16 %v47
    %v120 = vunpack.c.h.b16 %v47
    %v121 = vunpack.c.l.b16 %v48
    %v122 = vunpack.c.l.b16 %v49
    %v123 = vunpack.c.h.b16 %v49
    %v124 = vunpack.c.l.b16 %v50
    %v125 = vunpack.c.l.b16 %v51
    %v126 = vunpack.c.h.b16 %v51
    %v127 = vunpack.c.l.b16 %v52
    %v128 = vunpack.c.l.b16 %v53
    %v129 = vunpack.c.h.b16 %v53
    %v130 = vunpack.c.l.b16 %v54
    %v131 = vunpack.c.l.b16 %v55
    %v132 = vunpack.c.h.b16 %v55
    %v133 = vunpack.c.l.b16 %v56
    %v134 = vunpack.c.l.b16 %v57
    %v135 = vunpack.c.h.b16 %v57
    %v136 = vunpack.c.l.b16 %v58
    %v137 = vunpack.c.l.b16 %v59
    %v138 = vunpack.c.h.b16 %v59
    %v139 = vunpack.c.l.b16 %v60
    %v140 = vunpack.c.l.b16 %v61
    %v141 = vunpack.c.h.b16 %v61
    %v142 = vunpack.c.l.b16 %v62
    %v143 = vunpack.c.l.b16 %v63
    %v144 = vunpack.c.h.b16 %v63
    %v145 = vunpack.c.l.b16 %v64
    %v146 = vunpack.c.l.b16 %v65
    %v147 = vunpack.c.h.b16 %v65
    %v148 = vunpack.c.l.b16 %v66
    %v149 = vunpack.c.l.b16 %v67
    %v150 = vunpack.c.h.b16 %v67
    %v151 = vunpack.c.l.b16 %v68
    %v152 = vunpack.c.l.b16 %v69
    %v153 = vunpack.c.h.b16 %v69
    %v154 = vunpack.c.l.b16 %v70
    %v155 = vunpack.c.l.b16 %v71
    %v156 = vunpack.c.h.b16 %v71
    %v157 = vunpack.c.l.b16 %v72
    %v158 = vunpack.c.l.b16 %v73
    %v159 = vunpack.c.h.b16 %v73
    %v160 = vunpack.c.l.b16 %v74
    %v161 = vpack.c.b16 %v116, %v113
    %v162 = vpack.c.b16 %v117, %v114
    %v163 = vpack.c.b16 %v118, %v115
    %v164 = vpack.c.b16 %v122, %v119
    %v165 = vpack.c.b16 %v123, %v120
    %v166 = vpack.c.b16 %v124, %v121
    %v167 = vpack.c.b16 %v128, %v125
    %v168 = vpack.c.b16 %v129, %v126
    %v169 = vpack.c.b16 %v130, %v127
    %v170 = vpack.c.b16 %v134, %v131
    %v171 = vpack.c.b16 %v135, %v132
    %v172 = vpack.c.b16 %v136, %v133
    %v173 = vpack.c.b16 %v140, %v137
    %v174 = vpack.c.b16 %v141, %v138
    %v175 = vpack.c.b16 %v142, %v139
    %v176 = vpack.c.b16 %v146, %v143
    %v177 = vpack.c.b16 %v147, %v144
    %v178 = vpack.c.b16 %v148, %v145
    %v179 = vpack.c.b16 %v152, %v149
    %v180 = vpack.c.b16 %v153, %v150
    %v181 = vpack.c.b16 %v154, %v151
    %v182 = vpack.c.b16 %v158, %v155
    %v183 = vpack.c.b16 %v159, %v156
    %v184 = vpack.c.b16 %v160, %v157
    %209 = vmatprep.subr.bf16.mxu0 %v162
    %210 = vmatpush1.bf16.msra.mxu0 %v161
    %211 = vmatprep.subr.bf16.mxu0 %v165
    %212 = vmatpush1.bf16.msra.mxu0 %v164
    %213 = vmatprep.subr.bf16.mxu0 %v168
    %214 = vmatpush1.bf16.msra.mxu0 %v167
    %215 = vmatprep.subr.bf16.mxu0 %v171
    %216 = vmatpush1.bf16.msra.mxu0 %v170
    %217 = vmatprep.subr.bf16.mxu0 %v174
    %218 = vmatpush1.bf16.msra.mxu0 %v173
    %219 = vmatprep.subr.bf16.mxu0 %v177
    %220 = vmatpush1.bf16.msra.mxu0 %v176
    %221 = vmatprep.subr.bf16.mxu0 %v180
    %222 = vmatpush1.bf16.msra.mxu0 %v179
    %223 = vmatprep.subr.bf16.mxu0 %v183
    %224 = vmatpush1.bf16.msra.mxu0 %v182
    %225 = vmatprep.subr.bf16.mxu0 0
    %226 = vmatpush1.bf16.msra.mxu0 0
    %227 = vmatprep.subr.bf16.mxu0 0
    %228 = vmatpush1.bf16.msra.mxu0 0
    %229 = vmatprep.subr.bf16.mxu0 0
    %230 = vmatpush1.bf16.msra.mxu0 0
    %231 = vmatprep.subr.bf16.mxu0 0
    %232 = vmatpush1.bf16.msra.mxu0 0
    %233 = vmatprep.subr.bf16.mxu0 0
    %234 = vmatpush1.bf16.msra.mxu0 0
    %235 = vmatprep.subr.bf16.mxu0 0
    %236 = vmatpush1.bf16.msra.mxu0 0
    %237 = vmatprep.subr.bf16.mxu0 0
    %238 = vmatpush1.bf16.msra.mxu0 0
    %239 = vmatprep.subr.bf16.mxu0 0
    %240 = vmatpush1.bf16.msra.mxu0 0
    %241 = vmatprep.mubr.bf16.mxu0 0
    %242 = vmatmul.mubr.bf16.gmra.mrb[0].mxu0 %v79
    %v243 = vpop.f32.mrb[0].mxu0
    %v244 = vadd.f32 0.0, %v243
    %v245 = vpop.f32.mrb[0].mxu0
    %v246 = vadd.f32 0.0, %v245
    %v247 = vpop.f32.mrb[0].mxu0
    %v248 = vadd.f32 0.0, %v247
    %v249 = vpop.f32.mrb[0].mxu0
    %v250 = vadd.f32 0.0, %v249
    %251 = vdwg.mxu0
    %252 = vmatprep.subr.bf16.mxu0 0
    %253 = vmatpush1.bf16.msra.mxu0 %v163
    %254 = vmatprep.subr.bf16.mxu0 0
    %255 = vmatpush1.bf16.msra.mxu0 %v166
    %256 = vmatprep.subr.bf16.mxu0 0
    %257 = vmatpush1.bf16.msra.mxu0 %v169
    %258 = vmatprep.subr.bf16.mxu0 0
    %259 = vmatpush1.bf16.msra.mxu0 %v172
    %260 = vmatprep.subr.bf16.mxu0 0
    %261 = vmatpush1.bf16.msra.mxu0 %v175
    %262 = vmatprep.subr.bf16.mxu0 0
    %263 = vmatpush1.bf16.msra.mxu0 %v178
    %264 = vmatprep.subr.bf16.mxu0 0
    %265 = vmatpush1.bf16.msra.mxu0 %v181
    %266 = vmatprep.subr.bf16.mxu0 0
    %267 = vmatpush1.bf16.msra.mxu0 %v184
    %268 = vmatprep.subr.bf16.mxu0 0
    %269 = vmatpush1.bf16.msra.mxu0 0
    %270 = vmatprep.subr.bf16.mxu0 0
    %271 = vmatpush1.bf16.msra.mxu0 0
    %272 = vmatprep.subr.bf16.mxu0 0
    %273 = vmatpush1.bf16.msra.mxu0 0
    %274 = vmatprep.subr.bf16.mxu0 0
    %275 = vmatpush1.bf16.msra.mxu0 0
    %276 = vmatprep.subr.bf16.mxu0 0
    %277 = vmatpush1.bf16.msra.mxu0 0
    %278 = vmatprep.subr.bf16.mxu0 0
    %279 = vmatpush1.bf16.msra.mxu0 0
    %280 = vmatprep.subr.bf16.mxu0 0
    %281 = vmatpush1.bf16.msra.mxu0 0
    %282 = vmatprep.subr.bf16.mxu0 0
    %283 = vmatpush1.bf16.msra.mxu0 0
    %284 = vmatprep.mubr.bf16.mxu0 0
    %285 = vmatmul.mubr.bf16.gmra.mrb[0].mxu0 %v79
    %v286 = vpop.f32.mrb[0].mxu0
    %v287 = vadd.f32 0.0, %v286
    %v288 = vpop.f32.mrb[0].mxu0
    %v289 = vpop.f32.mrb[0].mxu0
    %v290 = vadd.f32 0.0, %v289
    %v291 = vpop.f32.mrb[0].mxu0
    %292 = vdwg.mxu0
    %v293 = vpack.c.bf16 %v248, %v244
    %v294 = vpack.c.bf16 %v250, %v246
    %v295 = vpack.c.bf16 %v290, %v287
    %v299 = vunpack.c.l.b16 %v293
    %v300 = vunpack.c.l.b16 %v294
    %v301 = vunpack.c.l.b16 %v295
    %v302 = vunpack.c.h.b16 %v293
    %v303 = vunpack.c.h.b16 %v294
    %v304 = vunpack.c.h.b16 %v295
    %v305 = vpack.c.b16 %v300, %v299
    %v306 = vpack.c.b16 %v301, %v301
    %v307 = vpack.c.b16 %v303, %v302
    %v308 = vpack.c.b16 %v304, %v304
    %313 = vst [vmem:[#allocation7] sm:$0xff] %v305
    %314 = vst [vmem:[#allocation7 + $0x8] sm:$0xf] %v306
    %315 = vst [vmem:[#allocation7 + $0xc] sm:$0xff] %v307
    %316 = vst [vmem:[#allocation7 + $0x14] sm:$0xf] %v308
    // Predicated region
    $region18: #{tpu_custom_call.1} parent=1 // pred_check
      _
    $region19: #{tpu_custom_call.1} parent=1 // pred_check_branch
      %318 = sbr.rel (0) target = $region21
    $region20: #{tpu_custom_call.1} parent=1 // pred_region
      %s320 = ssub.s32 384, 384
      %321 = vsyncadd [#allocation4], %s320
      %s322 = sshll.u32 [#allocation7], 4
      %s323 = int_to_ptr.vmem [resolvable:$true] %s322
      %328 = dma.vmem_to_hbm [thread:$0]  %s323, 384, %s2, [#allocation4], 192, 192, 12
    $region21: #{tpu_custom_call.1} parent=1 // pred_fallthru
      _
    // Predicated region
    $region22: #{tpu_custom_call.1} parent=1 // pred_check
      _
    $region23: #{tpu_custom_call.1} parent=1 // pred_check_branch
      %330 = sbr.rel (0) target = $region25
    $region24: #{tpu_custom_call.1} parent=1 // pred_region
      %331 = dma.done [#allocation4], 384
    $region25: #{tpu_custom_call.1} parent=1 // pred_fallthru
      _
    %332 = vsyncpa [#allocation3], 1
    %333 = vsyncpa [#allocation6], 1
    %334 = vsyncpa [#allocation4], 1

</llo_original>
